<compile_context>
chip_gen: v7x
topology: tpu7x:2x2x1
jax: 0.10.0
libtpu: 0.0.40
codegen_flags: <defaults>
</compile_context>

<pallas_src>
import functools

import jax
import jax.numpy as jnp
from jax.experimental import pallas as pl
from jax.experimental.pallas import tpu as pltpu

_MIB = 1024 * 1024
_TM_CAP = 512      # row-tile cap: grow tm first (cuts z2 HBM re-streams)
_TK_CAP = 1024     # column-tile cap: amortize per-grid-step overhead


def _ntxent_kernel(*refs, inv_temp, tm, tk, shift, batch,
                   pos_stream, resident, bounded, sum_via_dot):
    if pos_stream:
        z1_ref, z2_ref, z2p_ref, loss_ref, z1s_sc, m_sc, l_sc, t_sc = refs
    else:
        z1_ref, z2_ref, loss_ref, z1s_sc, m_sc, l_sc, t_sc = refs
        z2p_ref = None

    i = pl.program_id(0)
    k = pl.program_id(1)
    n_col = pl.num_programs(1)

    @pl.when(k == 0)
    def _init():
        # Hoisted once per row block: scale by 1/T and cast to the MXU dtype
        # exactly once; reused for every column step and the target logit.
        z1s_sc[...] = (z1_ref[...].astype(jnp.float32) * inv_temp
                       ).astype(z1s_sc.dtype)
        m_sc[...] = jnp.full(m_sc.shape, -jnp.inf, dtype=jnp.float32)
        l_sc[...] = jnp.zeros(l_sc.shape, dtype=jnp.float32)
        t_sc[...] = jnp.zeros(t_sc.shape, dtype=jnp.float32)

    z1s = z1s_sc[...]                                           # (tm, D)

    if resident:
        col0 = pl.multiple_of(k * tk, 8)
        z2_tile = z2_ref[pl.ds(col0, tk), :]                    # (tk, D)
    else:
        z2_tile = z2_ref[...]                                   # (tk, D)

    # Contract the feature dim of BOTH operands -> no z2 transpose / XLU copy.
    sim = jax.lax.dot_general(z1s, z2_tile, (((1,), (1,)), ((), ())),
                              preferred_element_type=jnp.float32)  # (tm, tk)

    def _row_sum(p):
        if sum_via_dot:
            # Offload the row-sum of exp to the (idle) MXU; row-max stays XLU.
            ones = jnp.ones((p.shape[1], 1), dtype=jnp.float32)
            return jax.lax.dot_general(p, ones, (((1,), (0,)), ((), ())),
                                       preferred_element_type=jnp.float32)
        return jnp.sum(p, axis=-1, keepdims=True)

    if bounded:
        # Caller guarantees L2-normalized embeddings: |sim| <= 1/T (+eps), so a
        # fixed max is safe -> no per-tile row max and no rescale of l.
        l_sc[...] = l_sc[...] + _row_sum(jnp.exp(sim - inv_temp))
    else:
        m_prev = m_sc[...]
        m_new = jnp.maximum(m_prev, jnp.max(sim, axis=-1, keepdims=True))
        l_sc[...] = (l_sc[...] * jnp.exp(m_prev - m_new)
                     + _row_sum(jnp.exp(sim - m_new)))
        m_sc[...] = m_new

    if not pos_stream:
        # Positive logit: slice the positive rows out of the z2 block that is
        # live anyway (no extra HBM stream), reduce row-wise into t_sc.
        pos_start = jax.lax.rem(i * tm + shift, batch)          # global z2 row
        if resident:
            pos_step = n_col - 1
            row0 = pos_start
        else:
            pos_step = pos_start // tk
            row0 = pos_start - pos_step * tk

        @pl.when(k == pos_step)
        def _positive():
            rows = z2_ref[pl.ds(pl.multiple_of(row0, 8), tm), :]
            t_sc[...] = jnp.sum(
                z1s.astype(jnp.float32) * rows.astype(jnp.float32),
                axis=-1, keepdims=True)

    @pl.when(k == n_col - 1)
    def _finalize():
        lse = (inv_temp if bounded else m_sc[...]) + jnp.log(l_sc[...])
        if pos_stream:
            tgt = jnp.sum(
                z1s.astype(jnp.float32) * z2p_ref[...].astype(jnp.float32),
                axis=-1, keepdims=True)
        else:
            tgt = t_sc[...]
        loss_ref[...] = lse - tgt


def _divisors_mult8(n, cap):
    return [d for d in range(8, min(cap, n) + 1, 8) if n % d == 0]


def _vmem_bytes(tm, tk, B, D, in_bytes, resident, pos_stream, z2_buffers):
    use = 2 * tm * D * in_bytes                       # z1 tile (double-buffer)
    use += (2 * B * D * in_bytes if resident
            else max(2, z2_buffers) * tk * D * in_bytes)        # z2
    if pos_stream:
        use += 2 * tm * D * in_bytes                  # z2_pos tile
    use += tm * D * in_bytes                          # scaled-z1 scratch
    use += 2 * tm * tk * 4                            # sim / exp live values
    use += 3 * tm * 4 + 2 * tm * 4                    # m/l/t scratch + out
    return use


def ntxent_loss(z1, z2, temperature: float = 0.5, *, tm=None, tk=None,
                use_bf16_matmul: bool = True, z2_resident=None,
                bounded_logits: bool = False, exp_sum_via_dot: bool = False,
                z2_buffers: int = 2, vmem_limit_bytes=None):
    """NT-Xent forward: mean_i CE((z1 @ z2.T)/T, labels), labels[i]=(i+B//2)%B."""
    B, D = z1.shape
    assert z2.shape == (B, D)
    shift = B // 2
    inv_temp = 1.0 / float(temperature)

    # bf16 end-to-end on the MXU path (default): halves HBM traffic of every
    # streamed input and uses the full-rate MXU; logsumexp math stays f32.
    in_dtype = jnp.bfloat16 if use_bf16_matmul else jnp.float32
    in_bytes = jnp.dtype(in_dtype).itemsize
    z1 = z1.astype(in_dtype)
    z2 = z2.astype(in_dtype)

    # --- generation-aware VMEM budget (v5e/v6e 128 MiB, v7x 64 MiB) ----------
    try:
        phys = int(getattr(pltpu.get_tpu_info(), "vmem_capacity_bytes"))
        if phys <= 0:
            raise ValueError
    except Exception:                       # conservative (v7x-sized) fallback
        phys = 64 * _MIB
    if vmem_limit_bytes is None:
        vmem_limit_bytes = max(32 * _MIB, min(int(0.75 * phys), 100 * _MIB))
    budget = int(0.85 * vmem_limit_bytes)

    # --- tile / residency selection -------------------------------------------
    if B % 8 != 0:
        # Tiny / ragged batch: one full-array block (exempt from (8,128) rule).
        tm = B if tm is None else tm
        tk = B if tk is None else tk
        resident = False
    else:
        tm_opts = _divisors_mult8(B, _TM_CAP)
        tk_opts = _divisors_mult8(B, _TK_CAP)
        tm_auto, tk_auto = tm is None, tk is None
        if tm_auto:
            aligned = [t for t in tm_opts if shift % t == 0]
            tm = (aligned or tm_opts)[-1]
        if tk_auto:
            pref = [t for t in tk_opts if t % tm == 0]
            tk = (pref or tk_opts)[-1]
        # Keep whole z2 VMEM-resident when it comfortably fits: one HBM pass
        # instead of n_row re-streams.
        if z2_resident is None:
            resident = 2 * B * D * in_bytes <= budget // 2
        else:
            resident = bool(z2_resident)

        def _fits(tm_, tk_, res_):
            ps = not (shift % tm_ == 0 and (res_ or tk_ % tm_ == 0))
            return _vmem_bytes(tm_, tk_, B, D, in_bytes, res_, ps,
                               z2_buffers) <= budget

        # Shrink auto-chosen tiles (tk first, then tm), then drop residency,
        # until the estimate fits the scoped-VMEM budget (v5e default is 16 MiB
        # but we raise vmem_limit_bytes explicitly above).
        while not _fits(tm, tk, resident):
            if tk_auto and tk > tk_opts[0]:
                tk = max(t for t in tk_opts if t < tk)
            elif tm_auto and tm > tm_opts[0]:
                tm = max(t for t in tm_opts if t < tm)
            elif resident and z2_resident is None:
                resident = False
            else:
                break

    assert B % tm == 0 and B % tk == 0, (B, tm, tk)
    assert (tm % 8 == 0 or tm == B) and (tk % 8 == 0 or tk == B), (tm, tk)
    n_row, n_col = B // tm, B // tk
    pos_stream = not (shift % tm == 0 and (resident or tk % tm == 0))

    # --- specs / operands ------------------------------------------------------
    in_specs = [pl.BlockSpec((tm, D), lambda i, k: (i, 0))]       # z1 row tile
    operands = [z1]
    if resident:
        in_specs.append(pl.BlockSpec((B, D), lambda i, k: (0, 0)))  # 1 fetch
    elif z2_buffers > 2:
        in_specs.append(pl.BlockSpec((tk, D), lambda i, k: (k, 0),
                                     pipeline_mode=pl.Buffered(z2_buffers)))
    else:
        in_specs.append(pl.BlockSpec((tk, D), lambda i, k: (k, 0)))
    operands.append(z2)

    if pos_stream:
        if shift % tm == 0:
            # Positives of row block i live exactly in z2 block (i+shift/tm)%n_row.
            blk = shift // tm
            pos_map = lambda i, k, _b=blk, _n=n_row: ((i + _b) % _n, 0)
            z2_pos = z2
        else:
            # Rare unaligned fallback: one O(B*D) roll in plain XLA.
            z2_pos = jnp.roll(z2, -shift, axis=0)
            pos_map = lambda i, k: (i, 0)
        in_specs.append(pl.BlockSpec((tm, D), pos_map))
        operands.append(z2_pos)

    kernel = functools.partial(
        _ntxent_kernel, inv_temp=inv_temp, tm=tm, tk=tk, shift=shift, batch=B,
        pos_stream=pos_stream, resident=resident, bounded=bounded_logits,
        sum_via_dot=exp_sum_via_dot)

    z2_passes = 1 if resident else n_row
    cost = pl.CostEstimate(
        flops=2 * B * B * D + 2 * B * D,
        transcendentals=B * B + B * n_col + B,
        bytes_accessed=int((1 + z2_passes + (1 if pos_stream else 0))
                           * B * D * in_bytes + B * 4))

    per_row = pl.pallas_call(
        kernel,
        out_shape=jax.ShapeDtypeStruct((B, 1), jnp.float32),
        grid_spec=pltpu.PrefetchScalarGridSpec(
            num_scalar_prefetch=0,
            grid=(n_row, n_col),                       # reduction axis last
            in_specs=in_specs,
            out_specs=pl.BlockSpec((tm, 1), lambda i, k: (i, 0)),
            scratch_shapes=[pltpu.VMEM((tm, D), in_dtype),      # z1 * (1/T)
                            pltpu.VMEM((tm, 1), jnp.float32),   # running max
                            pltpu.VMEM((tm, 1), jnp.float32),   # running sum
                            pltpu.VMEM((tm, 1), jnp.float32)],  # positive logit
        ),
        compiler_params=pltpu.CompilerParams(
            dimension_semantics=("parallel", "arbitrary"),
            vmem_limit_bytes=int(vmem_limit_bytes)),
        cost_estimate=cost,
    )(*operands)

    return jnp.mean(per_row)


def _ntxent_ref(z1, z2, temperature: float = 0.5):
    B = z1.shape[0]
    labels = (jnp.arange(B) + B // 2) % B
    sim = jnp.dot(z1.astype(jnp.float32), z2.astype(jnp.float32).T,
                  precision=jax.lax.Precision.HIGHEST) / temperature
    logprobs = jax.nn.log_softmax(sim, axis=-1)
    return -jnp.mean(logprobs[jnp.arange(B), labels])


if __name__ == "__main__":
    key = jax.random.PRNGKey(0)
    configs = [
        # f32 MXU path: tight checks against the exact reference.
        dict(B=16, D=32, temp=0.5, atol=1e-3,
             kw=dict(use_bf16_matmul=False, tm=8, tk=16)),              # resident, pos-slice
        dict(B=32, D=32, temp=0.5, atol=1e-3,
             kw=dict(use_bf16_matmul=False, tm=8, tk=16,
                     z2_resident=False)),                               # streamed, pos-slice @ k==pos_k
        dict(B=8, D=32, temp=0.5, atol=1e-3,
             kw=dict(use_bf16_matmul=False)),                           # unaligned -> rolled z2_pos
        dict(B=96, D=32, temp=0.5, atol=1e-3,
             kw=dict(use_bf16_matmul=False, tm=16, tk=24,
                     z2_resident=False)),                               # z2_pos via shifted index_map
        # Default bf16 MXU path: compare vs reference on bf16-rounded inputs
        # (1/T is a power of two, so only accumulation order differs).
        dict(B=64, D=128, temp=0.25, atol=5e-3, round_bf16=True,
             kw=dict()),                                                # resident z2, auto tiles
        dict(B=64, D=128, temp=0.25, atol=5e-3, round_bf16=True,
             kw=dict(z2_resident=False, z2_buffers=3, tm=16, tk=16)),   # streamed z2, Buffered(3)
        # Bounded-logits fast path (L2-normalized) + MXU row-sum of exp.
        dict(B=32, D=64, temp=0.5, atol=5e-3, round_bf16=True, normalize=True,
             kw=dict(bounded_logits=True, exp_sum_via_dot=True)),
    ]
    for idx, cfg in enumerate(configs):
        k1, k2 = jax.random.split(jax.random.fold_in(key, idx))
        z1 = jax.random.normal(k1, (cfg["B"], cfg["D"]), dtype=jnp.float32)
        z2 = jax.random.normal(k2, (cfg["B"], cfg["D"]), dtype=jnp.float32)
        if cfg.get("normalize"):
            z1 = z1 / jnp.linalg.norm(z1, axis=-1, keepdims=True)
            z2 = z2 / jnp.linalg.norm(z2, axis=-1, keepdims=True)
        loss = jax.block_until_ready(
            ntxent_loss(z1, z2, temperature=cfg["temp"], **cfg["kw"]))
        if cfg.get("round_bf16"):
            z1r = z1.astype(jnp.bfloat16).astype(jnp.float32)
            z2r = z2.astype(jnp.bfloat16).astype(jnp.float32)
        else:
            z1r, z2r = z1, z2
        ref = _ntxent_ref(z1r, z2r, temperature=cfg["temp"])
        assert jnp.allclose(loss, ref, atol=cfg["atol"], rtol=1e-3), (
            idx, float(loss), float(ref))
    print("KERNEL_OK")
</pallas_src>

<mosaic_0001>
module attributes {stable_mosaic.version = 11 : i64} {
  func.func @_ntxent_kernel(%arg0: i32, %arg1: i32, %arg2: memref<8x32xf32, #tpu.memory_space<vmem>>, %arg3: memref<16x32xf32, #tpu.memory_space<vmem>>, %arg4: memref<8x1xf32, #tpu.memory_space<vmem>>, %arg5: memref<8x32xf32, #tpu.memory_space<vmem>>, %arg6: memref<8x1xf32, #tpu.memory_space<vmem>>, %arg7: memref<8x1xf32, #tpu.memory_space<vmem>>, %arg8: memref<8x1xf32, #tpu.memory_space<vmem>>) attributes {dimension_semantics = [#tpu.dimension_semantics<parallel>, #tpu.dimension_semantics<arbitrary>], iteration_bounds = array<i64: 2, 1>, scalar_prefetch = 0 : i64, scratch_operands = 4 : i64, tpu.core_type = #tpu.core_type<tc>, window_params = [{transform_indices = @transform_0, window_bounds = array<i64: 8, 32>}, {pipeline_mode = #tpu.pipeline_mode<synchronous>, transform_indices = @transform_1, window_bounds = array<i64: 16, 32>}, {transform_indices = @transform_2, window_bounds = array<i64: 8, 1>}]} {
    %c0_i32 = arith.constant 0 : i32
    %0 = arith.cmpi eq, %arg1, %c0_i32 : i32
    %1 = arith.extui %0 : i1 to i32
    %c0_i32_0 = arith.constant 0 : i32
    %2 = arith.cmpi ne, %1, %c0_i32_0 : i32
    scf.if %2 {
      %c0_19 = arith.constant 0 : index
      %c0_20 = arith.constant 0 : index
      %34 = vector.load %arg2[%c0_19, %c0_20] : memref<8x32xf32, #tpu.memory_space<vmem>>, vector<8x32xf32>
      %cst_21 = arith.constant 2.000000e+00 : f32
      %35 = vector.broadcast %cst_21 : f32 to vector<8x32xf32>
      %36 = arith.mulf %34, %35 : vector<8x32xf32>
      %c0_22 = arith.constant 0 : index
      %c0_23 = arith.constant 0 : index
      %37 = vector.load %arg5[%c0_22, %c0_23] : memref<8x32xf32, #tpu.memory_space<vmem>>, vector<8x32xf32>
      tpu.vector_store %arg5[%c0_22, %c0_23], %36 {strides = array<i32>} : memref<8x32xf32, #tpu.memory_space<vmem>>, vector<8x32xf32>,
      %cst_24 = arith.constant 0xFF800000 : f32
      %38 = vector.broadcast %cst_24 : f32 to vector<8x1xf32>
      %c0_25 = arith.constant 0 : index
      %c0_26 = arith.constant 0 : index
      %39 = vector.load %arg6[%c0_25, %c0_26] : memref<8x1xf32, #tpu.memory_space<vmem>>, vector<8x1xf32>
      tpu.vector_store %arg6[%c0_25, %c0_26], %38 {strides = array<i32>} : memref<8x1xf32, #tpu.memory_space<vmem>>, vector<8x1xf32>,
      %cst_27 = arith.constant 0.000000e+00 : f32
      %40 = vector.broadcast %cst_27 : f32 to vector<8x1xf32>
      %c0_28 = arith.constant 0 : index
      %c0_29 = arith.constant 0 : index
      %41 = vector.load %arg7[%c0_28, %c0_29] : memref<8x1xf32, #tpu.memory_space<vmem>>, vector<8x1xf32>
      tpu.vector_store %arg7[%c0_28, %c0_29], %40 {strides = array<i32>} : memref<8x1xf32, #tpu.memory_space<vmem>>, vector<8x1xf32>,
      %cst_30 = arith.constant 0.000000e+00 : f32
      %42 = vector.broadcast %cst_30 : f32 to vector<8x1xf32>
      %c0_31 = arith.constant 0 : index
      %c0_32 = arith.constant 0 : index
      %43 = vector.load %arg8[%c0_31, %c0_32] : memref<8x1xf32, #tpu.memory_space<vmem>>, vector<8x1xf32>
      tpu.vector_store %arg8[%c0_31, %c0_32], %42 {strides = array<i32>} : memref<8x1xf32, #tpu.memory_space<vmem>>, vector<8x1xf32>,
    } else {
    }
    %c0 = arith.constant 0 : index
    %c0_1 = arith.constant 0 : index
    %3 = vector.load %arg5[%c0, %c0_1] : memref<8x32xf32, #tpu.memory_space<vmem>>, vector<8x32xf32>
    %c16_i32 = arith.constant 16 : i32
    %4 = arith.muli %arg1, %c16_i32 : i32
    %5 = tpu.assume_multiple %4, 8 : i32
    %6 = arith.index_cast %5 : i32 to index
    %c0_2 = arith.constant 0 : index
    %7 = vector.load %arg3[%6, %c0_2] : memref<16x32xf32, #tpu.memory_space<vmem>>, vector<16x32xf32>
    %cst = arith.constant dense<0.000000e+00> : vector<8x16xf32>
    %8 = tpu.matmul %3, %7, %cst {dimension_numbers = #tpu.dot_dimension_numbers<[1], [1], [0], [0], [0, 0, 1, 0], [], []>} : vector<8x32xf32>, vector<16x32xf32>, vector<8x16xf32> -> vector<8x16xf32>
    %c0_3 = arith.constant 0 : index
    %c0_4 = arith.constant 0 : index
    %9 = vector.load %arg6[%c0_3, %c0_4] : memref<8x1xf32, #tpu.memory_space<vmem>>, vector<8x1xf32>
    %cst_5 = arith.constant dense<0xFF800000> : vector<8xf32>
    %10 = vector.multi_reduction <maximumf>, %8, %cst_5 [1] : vector<8x16xf32> to vector<8xf32>
    %11 = vector.shape_cast %10 : vector<8xf32> to vector<8x1xf32>
    %12 = arith.maximumf %9, %11 : vector<8x1xf32>
    %c0_6 = arith.constant 0 : index
    %c0_7 = arith.constant 0 : index
    %13 = vector.load %arg7[%c0_6, %c0_7] : memref<8x1xf32, #tpu.memory_space<vmem>>, vector<8x1xf32>
    %14 = arith.subf %9, %12 : vector<8x1xf32>
    %15 = math.exp %14 : vector<8x1xf32>
    %16 = arith.mulf %13, %15 : vector<8x1xf32>
    %17 = vector.broadcast %12 : vector<8x1xf32> to vector<8x16xf32>
    %18 = arith.subf %8, %17 : vector<8x16xf32>
    %19 = math.exp %18 : vector<8x16xf32>
    %cst_8 = arith.constant dense<0.000000e+00> : vector<8xf32>
    %20 = vector.multi_reduction <add>, %19, %cst_8 [1] : vector<8x16xf32> to vector<8xf32>
    %21 = vector.shape_cast %20 : vector<8xf32> to vector<8x1xf32>
    %22 = arith.addf %16, %21 : vector<8x1xf32>
    %c0_9 = arith.constant 0 : index
    %c0_10 = arith.constant 0 : index
    %23 = vector.load %arg7[%c0_9, %c0_10] : memref<8x1xf32, #tpu.memory_space<vmem>>, vector<8x1xf32>
    tpu.vector_store %arg7[%c0_9, %c0_10], %22 {strides = array<i32>} : memref<8x1xf32, #tpu.memory_space<vmem>>, vector<8x1xf32>,
    %c0_11 = arith.constant 0 : index
    %c0_12 = arith.constant 0 : index
    %24 = vector.load %arg6[%c0_11, %c0_12] : memref<8x1xf32, #tpu.memory_space<vmem>>, vector<8x1xf32>
    tpu.vector_store %arg6[%c0_11, %c0_12], %12 {strides = array<i32>} : memref<8x1xf32, #tpu.memory_space<vmem>>, vector<8x1xf32>,
    %c8_i32 = arith.constant 8 : i32
    %25 = arith.muli %arg0, %c8_i32 : i32
    %c8_i32_13 = arith.constant 8 : i32
    %26 = arith.addi %25, %c8_i32_13 : i32
    %c16_i32_14 = arith.constant 16 : i32
    %27 = arith.remsi %26, %c16_i32_14 : i32
    %c0_i32_15 = arith.constant 0 : i32
    %28 = arith.cmpi eq, %arg1, %c0_i32_15 : i32
    %29 = arith.extui %28 : i1 to i32
    %c0_i32_16 = arith.constant 0 : i32
    %30 = arith.cmpi ne, %29, %c0_i32_16 : i32
    scf.if %30 {
      %34 = tpu.assume_multiple %27, 8 : i32
      %35 = arith.index_cast %34 : i32 to index
      %c0_19 = arith.constant 0 : index
      %36 = vector.load %arg3[%35, %c0_19] : memref<16x32xf32, #tpu.memory_space<vmem>>, vector<8x32xf32>
      %37 = arith.mulf %3, %36 : vector<8x32xf32>
      %cst_20 = arith.constant dense<0.000000e+00> : vector<8xf32>
      %38 = vector.multi_reduction <add>, %37, %cst_20 [1] : vector<8x32xf32> to vector<8xf32>
      %39 = vector.shape_cast %38 : vector<8xf32> to vector<8x1xf32>
      %c0_21 = arith.constant 0 : index
      %c0_22 = arith.constant 0 : index
      %40 = vector.load %arg8[%c0_21, %c0_22] : memref<8x1xf32, #tpu.memory_space<vmem>>, vector<8x1xf32>
      tpu.vector_store %arg8[%c0_21, %c0_22], %39 {strides = array<i32>} : memref<8x1xf32, #tpu.memory_space<vmem>>, vector<8x1xf32>,
    } else {
    }
    %c0_i32_17 = arith.constant 0 : i32
    %31 = arith.cmpi eq, %arg1, %c0_i32_17 : i32
    %32 = arith.extui %31 : i1 to i32
    %c0_i32_18 = arith.constant 0 : i32
    %33 = arith.cmpi ne, %32, %c0_i32_18 : i32
    scf.if %33 {
      %c0_19 = arith.constant 0 : index
      %c0_20 = arith.constant 0 : index
      %34 = vector.load %arg6[%c0_19, %c0_20] : memref<8x1xf32, #tpu.memory_space<vmem>>, vector<8x1xf32>
      %c0_21 = arith.constant 0 : index
      %c0_22 = arith.constant 0 : index
      %35 = vector.load %arg7[%c0_21, %c0_22] : memref<8x1xf32, #tpu.memory_space<vmem>>, vector<8x1xf32>
      %36 = math.log %35 : vector<8x1xf32>
      %37 = arith.addf %34, %36 : vector<8x1xf32>
      %c0_23 = arith.constant 0 : index
      %c0_24 = arith.constant 0 : index
      %38 = vector.load %arg8[%c0_23, %c0_24] : memref<8x1xf32, #tpu.memory_space<vmem>>, vector<8x1xf32>
      %39 = arith.subf %37, %38 : vector<8x1xf32>
      %c0_25 = arith.constant 0 : index
      %c0_26 = arith.constant 0 : index
      %40 = vector.load %arg4[%c0_25, %c0_26] : memref<8x1xf32, #tpu.memory_space<vmem>>, vector<8x1xf32>
      tpu.vector_store %arg4[%c0_25, %c0_26], %39 {strides = array<i32>} : memref<8x1xf32, #tpu.memory_space<vmem>>, vector<8x1xf32>,
    } else {
    }
    return
  }
  func.func @transform_0(%arg0: i32, %arg1: i32) -> (i32, i32) {
    %c0_i32 = arith.constant 0 : i32
    %c0_i32_0 = arith.constant 0 : i32
    return %arg0, %c0_i32 : i32, i32
  }
  func.func @transform_1(%arg0: i32, %arg1: i32) -> (i32, i32) {
    %c0_i32 = arith.constant 0 : i32
    %c0_i32_0 = arith.constant 0 : i32
    %c0_i32_1 = arith.constant 0 : i32
    return %c0_i32, %c0_i32_0 : i32, i32
  }
  func.func @transform_2(%arg0: i32, %arg1: i32) -> (i32, i32) {
    %c0_i32 = arith.constant 0 : i32
    %c0_i32_0 = arith.constant 0 : i32
    return %arg0, %c0_i32 : i32, i32
  }
}

</mosaic_0001>

<llo_original>
// kernel: tpu_custom_call.1
$region0: #{tpu_custom_call.1}
  #allocation0 [shape = 'u32[]', space=smem, size = 0x4, offset = 0x4, fixed_abs, tag = 'smem constant byte address 0x4 - core index']
  #allocation1 [shape = 'u32[144,128]{1,0:T(1,128)}', space=vmem, size = 0x12000, scoped, tag = 'internal scratch']
  #allocation2 [shape = 'f32[8,32]{1,0:T(8,128)}', space=vmem, size = 0x1000, scoped, tag = 'scratch operand']
  #allocation3 [shape = 'f32[8,1]{1,0:T(8,128)}', space=vmem, size = 0x1000, scoped, tag = 'scratch operand']
  #allocation4 [shape = 'f32[8,1]{1,0:T(8,128)}', space=vmem, size = 0x1000, scoped, tag = 'scratch operand']
  #allocation5 [shape = 'f32[8,1]{1,0:T(8,128)}', space=vmem, size = 0x1000, scoped, tag = 'scratch operand']
  %s0 = inlined_call_operand.hbm [shape: f32[16,32], index: 0, kind: input, shape index: {}]
  %s1 = inlined_call_operand.hbm [shape: f32[16,32], index: 1, kind: input, shape index: {}]
  %s2 = inlined_call_operand.vmem [shape: f32[16,1], index: 2, kind: output, shape index: {}]
  %s3 = sld [smem:[#allocation0]]
  $region57: #{tpu_custom_call.1} parent=0
    _
  %s5 = ssub.s32 1, %s3
  %s6 = scalar_select 0, %s5, %s3
  $region1: #{tpu_custom_call.1} parent=0
    #allocation6 [shape = 'u8[8192]{0}', space=vmem, size = 0x2000, scoped, tag = 'input window, operand 0']
    #allocation7 [shape = 's32[2]{0}', space=sflag, size = 0x8, scoped, tag = 'scoped memory for tpu_custom_call.1']
    #allocation8 [shape = 'u8[8192]{0}', space=vmem, size = 0x2000, scoped, tag = 'input window, operand 1, single buffered']
    #allocation9 [shape = 's32[1]{0}', space=sflag, size = 0x4, scoped, tag = 'scoped memory for tpu_custom_call.1']
    %7 = vsyncpa [#allocation7], 0
    %s8 = scalar_lea.sflag [#allocation7], 1
    %9 = vsyncpa %s8, 0
    %10 = vsyncpa [#allocation9], 0
    loop: start=0, step=1, limit=4
    $region2: #{tpu_custom_call.1} parent=1 // loop_pre_header
      _
    $region3: #{tpu_custom_call.1} parent=1 // loop_header
      %s12 = sphi 0, %s16
      %p13 = scmp.ge.s32.totalorder %s12, 4
      %s19 = sphi 0, %s31
      %s20 = sphi 0, %s27
      %s21 = sphi 0, %s19
      %s22 = sphi 0, %s20
      %s23 = sphi 0, %s21
      %s24 = sphi 0, %s22
      %s34 = sphi 0, %s36
      %s37 = sphi 0, %s34
      %s38 = sphi 0, %s37
      %s54 = sphi 0, %s38
      %s58 = sphi 0, %s58
      %s60 = sphi 0, %s58
      %s61 = sphi 0, %s60
      %s75 = sphi 0, %s61
      %s81 = sphi 0, %s83
      %s84 = sphi 0, %s81
      %s85 = sphi 0, %s84
      %s101 = sphi 0, %s85
    $region4: #{tpu_custom_call.1} parent=1 // loop_header_branch
      %15 = sbr.rel (%p13) target = $region8
    $region5: #{tpu_custom_call.1} parent=1 // loop_body
      %s17 = ssub.s32 %s12, 1
      %s18 = ssub.s32 %s12, 2
      %s25 = sadd.s32 1, %s20
      %p26 = scmp.ge.s32.totalorder %s25, 1
      %s27 = scalar_select %p26, 0, %s25
      %s28 = sadd.s32 1, %s19
      %s29 = scalar_select %p26, %s28, %s19
      %p30 = scmp.ge.s32.totalorder %s29, 2
      %s31 = scalar_select %p30, 0, %s29
      %s32 = ssub.s32 %s19, %s31
      %p33 = scmp.eq.s32.totalorder %s32, 0
      %s35 = sadd.s32 %s34, 1
      %s36 = scalar_select %p33, %s34, %s35
      %p39 = pneg %p33
      %p40 = scmp.eq.s32.totalorder %s12, 1
      %p41 = por %p39, %p40
      %p42 = scmp.ne.s32.totalorder %s34, %s37
      %p43 = scmp.eq.s32.totalorder %s12, 0
      %p44 = por %p42, %p43
      %p45 = scmp.ne.s32.totalorder %s34, %s37
      %p46 = scmp.eq.s32.totalorder %s17, 1
      %p47 = por %p45, %p46
      %p48 = scmp.ne.s32.totalorder %s37, %s38
      %p49 = scmp.eq.s32.totalorder %s17, 0
      %p50 = por %p48, %p49
      %p51 = scmp.ne.s32.totalorder %s37, %s38
      %p52 = scmp.eq.s32.totalorder %s18, 1
      %p53 = por %p51, %p52
      %p55 = scmp.ne.s32.totalorder %s38, %s54
      %p56 = scmp.eq.s32.totalorder %s18, 0
      %p57 = por %p55, %p56
      %s59 = sadd.s32 %s58, 1
      %p62 = scmp.eq.s32.totalorder %s12, 1
      %p63 = scmp.ne.s32.totalorder %s58, %s60
      %p64 = scmp.eq.s32.totalorder %s12, 0
      %p65 = por %p63, %p64
      %p66 = scmp.ne.s32.totalorder %s58, %s60
      %p67 = scmp.eq.s32.totalorder %s17, 1
      %p68 = por %p66, %p67
      %p69 = scmp.ne.s32.totalorder %s60, %s61
      %p70 = scmp.eq.s32.totalorder %s17, 0
      %p71 = por %p69, %p70
      %p72 = scmp.ne.s32.totalorder %s60, %s61
      %p73 = scmp.eq.s32.totalorder %s18, 1
      %p74 = por %p72, %p73
      %p76 = scmp.ne.s32.totalorder %s61, %s75
      %p77 = scmp.eq.s32.totalorder %s18, 0
      %p78 = por %p76, %p77
      %s79 = ssub.s32 %s19, %s31
      %p80 = scmp.eq.s32.totalorder %s79, 0
      %s82 = sadd.s32 %s81, 1
      %s83 = scalar_select %p80, %s81, %s82
      %p86 = pneg %p80
      %p87 = scmp.eq.s32.totalorder %s12, 1
      %p88 = por %p86, %p87
      %p89 = scmp.ne.s32.totalorder %s81, %s84
      %p90 = scmp.eq.s32.totalorder %s12, 0
      %p91 = por %p89, %p90
      %p92 = scmp.ne.s32.totalorder %s81, %s84
      %p93 = scmp.eq.s32.totalorder %s17, 1
      %p94 = por %p92, %p93
      %p95 = scmp.ne.s32.totalorder %s84, %s85
      %p96 = scmp.eq.s32.totalorder %s17, 0
      %p97 = por %p95, %p96
      %p98 = scmp.ne.s32.totalorder %s84, %s85
      %p99 = scmp.eq.s32.totalorder %s18, 1
      %p100 = por %p98, %p99
      %p102 = scmp.ne.s32.totalorder %s85, %s101
      %p103 = scmp.eq.s32.totalorder %s18, 0
      %p104 = por %p102, %p103
      %p105 = scmp.le.s32.totalorder 1, %s12
      %p106 = scmp.lt.s32.totalorder %s12, 3
      %p107 = pnand %p105, %p106
      %p108 = pneg %p107
      // Predicated region
      $region9: #{tpu_custom_call.1} parent=5 // pred_check
        _
      $region10: #{tpu_custom_call.1} parent=5 // pred_check_branch
        %110 = sbr.rel (%p107) target = $region12
      $region11: #{tpu_custom_call.1} parent=5 // pred_region
        %s111 = ssub.s32 %s12, 1
        // Predicated region
        $region13: #{tpu_custom_call.1} parent=11 // pred_check
          %p112 = pneg %p71
        $region14: #{tpu_custom_call.1} parent=11 // pred_check_branch
          %114 = sbr.rel (%p112) target = $region16
        $region15: #{tpu_custom_call.1} parent=11 // pred_region
          %s116 = ssub.s32 256, 256
          %117 = vsyncadd [#allocation9], %s116
          %s118 = sshll.u32 [#allocation8], 4
          %s119 = int_to_ptr.vmem [resolvable:$true] %s118
          %124 = dma.hbm_to_vmem [thread:$0]  %s1, 256, %s119, [#allocation9], 128, 128, 8
        $region16: #{tpu_custom_call.1} parent=11 // pred_fallthru
          _
      $region12: #{tpu_custom_call.1} parent=5 // pred_fallthru
        _
      %p125 = scmp.lt.s32.totalorder %s12, 2
      // Predicated region
      $region17: #{tpu_custom_call.1} parent=5 // pred_check
        %p126 = pneg %p125
      $region18: #{tpu_custom_call.1} parent=5 // pred_check_branch
        %128 = sbr.rel (%p126) target = $region20
      $region19: #{tpu_custom_call.1} parent=5 // pred_region
        // Predicated region
        $region21: #{tpu_custom_call.1} parent=19 // pred_check
          %p129 = pneg %p44
        $region22: #{tpu_custom_call.1} parent=19 // pred_check_branch
          %131 = sbr.rel (%p129) target = $region24
        $region23: #{tpu_custom_call.1} parent=19 // pred_region
          %s132 = sand.u32 %s34, 1
          %s133 = scalar_lea.sflag [#allocation7], %s132
          %s134 = sand.u32 %s34, 1
          %s135 = smul.addr %s134, 8
          %s136 = scalar_lea.vmem [#allocation6], %s135
          %s138 = ssub.s32 128, 128
          %139 = vsyncadd %s133, %s138
          %s140 = smul.addr %s19, 128
          %s141 = scalar_lea.hbm %s0, %s140
          %s143 = sshll.u32 %s136, 4
          %s144 = int_to_ptr.vmem [resolvable:$true] %s143
          %146 = dma.hbm_to_vmem [thread:$0]  %s141, 128, %s144, %s133
        $region24: #{tpu_custom_call.1} parent=19 // pred_fallthru
          _
      $region20: #{tpu_custom_call.1} parent=5 // pred_fallthru
        _
      %p147 = scmp.le.s32.totalorder 1, %s12
      %p148 = scmp.lt.s32.totalorder %s12, 3
      %p149 = pnand %p147, %p148
      %p150 = pneg %p149
      // Predicated region
      $region25: #{tpu_custom_call.1} parent=5 // pred_check
        _
      $region26: #{tpu_custom_call.1} parent=5 // pred_check_branch
        %152 = sbr.rel (%p149) target = $region28
      $region27: #{tpu_custom_call.1} parent=5 // pred_region
        %s153 = ssub.s32 %s12, 1
        %s154 = sand.u32 %s37, 1
        %s155 = scalar_lea.sflag [#allocation7], %s154
        %s156 = sand.u32 %s37, 1
        %s157 = smul.addr %s156, 8
        %s158 = scalar_lea.vmem [#allocation6], %s157
        // Predicated region
        $region29: #{tpu_custom_call.1} parent=27 // pred_check
          %p159 = pneg %p50
        $region30: #{tpu_custom_call.1} parent=27 // pred_check_branch
          %161 = sbr.rel (%p159) target = $region32
        $region31: #{tpu_custom_call.1} parent=27 // pred_region
          %162 = dma.done %s155, 128
        $region32: #{tpu_custom_call.1} parent=27 // pred_fallthru
          _
        // Predicated region
        $region33: #{tpu_custom_call.1} parent=27 // pred_check
          %p163 = pneg %p71
        $region34: #{tpu_custom_call.1} parent=27 // pred_check_branch
          %165 = sbr.rel (%p163) target = $region36
        $region35: #{tpu_custom_call.1} parent=27 // pred_region
          %166 = dma.done [#allocation9], 256
        $region36: #{tpu_custom_call.1} parent=27 // pred_fallthru
          _
        %s167 = sand.u32 %s37, 1
        %s168 = scalar_lea.sflag [#allocation7], %s167
        %s169 = sand.u32 %s37, 1
        %s170 = smul.addr %s169, 8
        %s171 = scalar_lea.vmem [#allocation6], %s170
        %p172 = pneg %p50
        %p173 = pneg %p47
        %p174 = pneg %p71
        %p175 = pneg %p68
        %p176 = pneg %p97
        %p177 = pneg %p94
        %p178 = scmp.lt.s32.totalorder %s21, 1
        %s179 = scalar_select %p178, %s21, 1
        %s180 = smul.addr %s179, 8
        %s181 = scalar_lea.vmem %s2, %s180
        %p182 = scmp.lt.s32.totalorder %s21, 1
        %s183 = scalar_select %p182, %s21, 1
        %s184 = smul.addr %s183, 8
        %s185 = scalar_lea.vmem %s2, %s184
        %p186 = scmp.eq.s32.totalorder %s22, 0
        // Predicated region
        $region37: #{tpu_custom_call.1} parent=27 // pred_check
          %p187 = pneg %p186
        $region38: #{tpu_custom_call.1} parent=27 // pred_check_branch
          %189 = sbr.rel (%p187) target = $region40
        $region39: #{tpu_custom_call.1} parent=27 // pred_region
          %v190 = vld [vmem:[%s158] sm:$0xff]
          %v191 = vmul.f32 %v190, 2.0
          %vm192 = vcmask 261120
          %193 = vst.msk [vmem:[#allocation2] sm:$0xff] %vm192, %v191
          %vm194 = vcmask 7168
          %195 = vst.msk [vmem:[#allocation3] sm:$0xff] %vm194, -inf
          %196 = vst.msk [vmem:[#allocation4] sm:$0xff] %vm194, 0.0
          %197 = vst.msk [vmem:[#allocation5] sm:$0xff] %vm194, 0.0
        $region40: #{tpu_custom_call.1} parent=27 // pred_fallthru
          _
        %v198 = vld [vmem:[#allocation2] sm:$0xff]
        %s199 = smul.u32 %s22, 16
        %s200 = scalar_lea.vmem [#allocation8], %s199
        %v201 = vld [vmem:[%s200] sm:$0xff]
        %v202 = vld [vmem:[%s200 + $0x8] sm:$0xff]
        %vm203 = vcmask 261120
        %v205 = vsel %vm203, %v198, 0
        %v208 = vsel %vm203, %v201, 0
        %v211 = vsel %vm203, %v202, 0
        %213 = vmatprep.subr.mxu0 0.0
        %214 = vmatpush1.xpose.msra.mxu0 %v208
        %215 = vmatprep.subr.mxu0 0.0
        %216 = vmatpush1.xpose.msra.mxu0 %v211
        %217 = vmatprep.subr.mxu0 0.0
        %218 = vmatpush1.xpose.msra.mxu0 0.0
        %219 = vmatprep.subr.mxu0 0.0
        %220 = vmatpush1.xpose.msra.mxu0 0.0
        %221 = vmatprep.subr.mxu0 0.0
        %222 = vmatpush1.xpose.msra.mxu0 0.0
        %223 = vmatprep.subr.mxu0 0.0
        %224 = vmatpush1.xpose.msra.mxu0 0.0
        %225 = vmatprep.subr.mxu0 0.0
        %226 = vmatpush1.xpose.msra.mxu0 0.0
        %227 = vmatprep.subr.mxu0 0.0
        %228 = vmatpush1.xpose.msra.mxu0 0.0
        %229 = vmatprep.subr.mxu0 0.0
        %230 = vmatpush1.xpose.msra.mxu0 0.0
        %231 = vmatprep.subr.mxu0 0.0
        %232 = vmatpush1.xpose.msra.mxu0 0.0
        %233 = vmatprep.subr.mxu0 0.0
        %234 = vmatpush1.xpose.msra.mxu0 0.0
        %235 = vmatprep.subr.mxu0 0.0
        %236 = vmatpush1.xpose.msra.mxu0 0.0
        %237 = vmatprep.subr.mxu0 0.0
        %238 = vmatpush1.xpose.msra.mxu0 0.0
        %239 = vmatprep.subr.mxu0 0.0
        %240 = vmatpush1.xpose.msra.mxu0 0.0
        %241 = vmatprep.subr.mxu0 0.0
        %242 = vmatpush1.xpose.msra.mxu0 0.0
        %243 = vmatprep.subr.mxu0 0.0
        %244 = vmatpush1.xpose.msra.mxu0 0.0
        %245 = vmatprep.subr.mxu0 0.0
        %246 = vmatpush1.xpose.msra.mxu0 0.0
        %247 = vmatprep.subr.mxu0 0.0
        %248 = vmatpush1.xpose.msra.mxu0 0.0
        %249 = vmatprep.subr.mxu0 0.0
        %250 = vmatpush1.xpose.msra.mxu0 0.0
        %251 = vmatprep.subr.mxu0 0.0
        %252 = vmatpush1.xpose.msra.mxu0 0.0
        %253 = vmatprep.subr.mxu0 0.0
        %254 = vmatpush1.xpose.msra.mxu0 0.0
        %255 = vmatprep.subr.mxu0 0.0
        %256 = vmatpush1.xpose.msra.mxu0 0.0
        %257 = vmatprep.subr.mxu0 0.0
        %258 = vmatpush1.xpose.msra.mxu0 0.0
        %259 = vmatprep.subr.mxu0 0.0
        %260 = vmatpush1.xpose.msra.mxu0 0.0
        %261 = vmatprep.subr.mxu0 0.0
        %262 = vmatpush1.xpose.msra.mxu0 0.0
        %263 = vmatprep.subr.mxu0 0.0
        %264 = vmatpush1.xpose.msra.mxu0 0.0
        %265 = vmatprep.subr.mxu0 0.0
        %266 = vmatpush1.xpose.msra.mxu0 0.0
        %267 = vmatprep.subr.mxu0 0.0
        %268 = vmatpush1.xpose.msra.mxu0 0.0
        %269 = vmatprep.subr.mxu0 0.0
        %270 = vmatpush1.xpose.msra.mxu0 0.0
        %271 = vmatprep.subr.mxu0 0.0
        %272 = vmatpush1.xpose.msra.mxu0 0.0
        %273 = vmatprep.subr.mxu0 0.0
        %274 = vmatpush1.xpose.msra.mxu0 0.0
        %275 = vmatprep.subr.mxu0 0.0
        %276 = vmatpush1.xpose.msra.mxu0 0.0
        %277 = vmatprep.mubr.f32.mxu0 0.0
        %278 = vmatmul.mubr.f32.gmra.mrb[0].mxu0 %v205
        %v279 = vpop.f32.mrb[0].mxu0
        %v280 = vadd.f32 0.0, %v279
        %v281 = vpop.f32.mrb[0].mxu0
        %282 = vdwg.mxu0
        %v283 = vld [vmem:[#allocation3] sm:$0xff]
        %vm284 = vcmask 130048
        %v285 = vsel %vm284, %v280, -inf
        %286 = vmax.xlane.f32.xlu0 %v285
        %v287 = vpop.xlane.xlu0 %286
        %v288 = vmax.f32 %v283, %v287
        %v289 = vld [vmem:[#allocation4] sm:$0xff]
        %v290 = vsub.f32 %v283, %v288
        %v291 = vmul.f32 %v290, 1.442695
        %v292 = vpow.pop %v291
        %v293 = vmul.f32 %v289, %v292
        %295 = vset.pattern.permute.xlu0 0
        %296 = vperm.xlu0 %295, %v288
        %v297 = vpop.permute.xlu0 %296
        %v299 = vsub.f32 %v280, %v297
        %v300 = vmul.f32 %v299, 1.442695
        %v301 = vpow.pop %v300
        %v302 = vsel %vm284, %v301, 0.0
        %303 = vadd.xlane.f32.xlu0 %v302
        %v304 = vpop.xlane.xlu0 %303
        %v305 = vadd.f32 %v293, %v304
        %vm306 = vcmask 7168
        %307 = vst.msk [vmem:[#allocation4] sm:$0xff] %vm306, %v305
        %308 = vst.msk [vmem:[#allocation3] sm:$0xff] %vm306, %v288
        %s309 = smul.u32 %s21, 8
        %s310 = sadd.s32 %s309, 8
        %p311 = scmp.lt.s32.totalorder %s310, 0
        %s312 = ssub.s32 0, %s310
        %s313 = scalar_select %p311, %s312, %s310
        %s314 = sand.u32 %s313, 15
        %s315 = ssub.s32 0, %s314
        %s316 = scalar_select %p311, %s315, %s314
        // Predicated region
        $region41: #{tpu_custom_call.1} parent=27 // pred_check
          %p317 = pneg %p186
        $region42: #{tpu_custom_call.1} parent=27 // pred_check_branch
          %319 = sbr.rel (%p317) target = $region44
        $region43: #{tpu_custom_call.1} parent=27 // pred_region
          %s320 = scalar_lea.vmem [#allocation8], %s316
          %v321 = vld [vmem:[%s320] sm:$0xff]
          %v322 = vmul.f32 %v198, %v321
          %v323 = vsel %vm203, %v322, 0.0
          %324 = vadd.xlane.f32.xlu0 %v323
          %v325 = vpop.xlane.xlu0 %324
          %326 = vst.msk [vmem:[#allocation5] sm:$0xff] %vm306, %v325
          %v327 = vld [vmem:[#allocation3] sm:$0xff]
          %v328 = vld [vmem:[#allocation4] sm:$0xff]
          %v329 = vlog2.pop %v328
          %v330 = vmul.f32 %v329, 0.6931472
          %v331 = vadd.f32 %v327, %v330
          %v332 = vld [vmem:[#allocation5] sm:$0xff]
          %v333 = vsub.f32 %v331, %v332
          %334 = vst.msk [vmem:[%s185] sm:$0xff] %vm306, %v333
        $region44: #{tpu_custom_call.1} parent=27 // pred_fallthru
          _
        %p335 = scmp.lt.s32.totalorder %s21, 1
        %s336 = scalar_select %p335, %s21, 1
        %s337 = smul.addr %s336, 8
        %s338 = scalar_lea.vmem %s2, %s337
        // Predicated region
        $region45: #{tpu_custom_call.1} parent=27 // pred_check
          %p339 = pneg %p94
        $region46: #{tpu_custom_call.1} parent=27 // pred_check_branch
          %341 = sbr.rel (%p339) target = $region48
        $region47: #{tpu_custom_call.1} parent=27 // pred_region
          _
        $region48: #{tpu_custom_call.1} parent=27 // pred_fallthru
          _
      $region28: #{tpu_custom_call.1} parent=5 // pred_fallthru
        _
      %p342 = scmp.le.s32.totalorder 2, %s12
      // Predicated region
      $region49: #{tpu_custom_call.1} parent=5 // pred_check
        %p343 = pneg %p342
      $region50: #{tpu_custom_call.1} parent=5 // pred_check_branch
        %345 = sbr.rel (%p343) target = $region52
      $region51: #{tpu_custom_call.1} parent=5 // pred_region
        %s346 = ssub.s32 %s12, 2
        // Predicated region
        $region53: #{tpu_custom_call.1} parent=51 // pred_check
          %p347 = pneg %p100
        $region54: #{tpu_custom_call.1} parent=51 // pred_check_branch
          %349 = sbr.rel (%p347) target = $region56
        $region55: #{tpu_custom_call.1} parent=51 // pred_region
          %p350 = scmp.lt.s32.totalorder %s23, 1
          %s351 = scalar_select %p350, %s23, 1
          %s352 = smul.addr %s351, 8
          %s353 = scalar_lea.vmem %s2, %s352
        $region56: #{tpu_custom_call.1} parent=51 // pred_fallthru
          _
      $region52: #{tpu_custom_call.1} parent=5 // pred_fallthru
        _
    $region6: #{tpu_custom_call.1} parent=1 // loop_footer
      %s16 = sadd.s32 1, %s12
    $region7: #{tpu_custom_call.1} parent=1 // loop_footer_branch
      %11 = sbr.rel target = $region3
    $region8: #{tpu_custom_call.1} parent=1 // loop_exit
      _
    %354 = vsyncpa [#allocation7], 1
    %s355 = scalar_lea.sflag [#allocation7], 1
    %356 = vsyncpa %s355, 1
    %357 = vsyncpa [#allocation9], 1

</llo_original>
